<compile_context>
chip_gen: v7x
topology: tpu7x:2x2x1
jax: 0.10.0
libtpu: 0.0.40
codegen_flags: <defaults>
</compile_context>

<pallas_src>
import functools

import numpy as np

import jax
import jax.numpy as jnp
from jax.experimental import pallas as pl
from jax.experimental.pallas import tpu as pltpu


# ---------------------------------------------------------------------------
# Pallas kernel: per (batch, Cout-tile) grid point, for each branch:
#     y = W_tile @ x @ R^T + b_tile      (conv-before-resize, exact reassoc.)
# x  : (C, Hi*Wi)  f32  (cast to bf16 in-kernel)
# W  : (ct, C)     f32  (cast to bf16 in-kernel)
# R^T: (Hi*Wi, Ho*Wo) f32 (trace-time constant)
# b  : (ct, 1)     f32
# ---------------------------------------------------------------------------
def _fused_head_kernel(x1_ref, x2_ref, rt1_ref, rt2_ref, w1_ref, w2_ref,
                       b1_ref, b2_ref, o1_ref, o2_ref):
    def branch(x_ref, rt_ref, w_ref, b_ref, o_ref):
        x = x_ref[0].astype(jnp.bfloat16)                       # (C, HiWi)
        w = w_ref[...].astype(jnp.bfloat16)                     # (ct, C)
        # 1x1 conv first (channel mixing): bf16 operands, f32 accumulation.
        c = jnp.dot(w, x, preferred_element_type=jnp.float32)   # (ct, HiWi)
        # Bilinear resize (spatial mixing): keep c in f32 -> only one bf16
        # rounding in the whole chain.
        y = jnp.dot(c, rt_ref[...],
                    preferred_element_type=jnp.float32)         # (ct, HoWo)
        o_ref[0] = (y + b_ref[...]).astype(o_ref.dtype)

    branch(x1_ref, rt1_ref, w1_ref, b1_ref, o1_ref)
    branch(x2_ref, rt2_ref, w2_ref, b2_ref, o2_ref)


# ---------------------------------------------------------------------------
# NumPy (trace-time) helpers: interpolation matrices become baked constants.
# ---------------------------------------------------------------------------
def bilinear_matrix_np(in_size: int, out_size: int) -> np.ndarray:
    """Row-stochastic (out_size, in_size) matrix for 1-D bilinear interpolation
    with align_corners=True.  Matches torch.nn.functional.interpolate; for
    out_size == 1 PyTorch uses scale=0 -> source index 0, reproduced here."""
    if out_size == 1:
        src = np.zeros((1,), np.float64)
    else:
        scale = (in_size - 1) / (out_size - 1)
        src = np.arange(out_size, dtype=np.float64) * scale
    i0 = np.clip(np.floor(src).astype(np.int64), 0, in_size - 1)
    i1 = np.clip(i0 + 1, 0, in_size - 1)
    w1 = (src - i0).astype(np.float32)
    w0 = (1.0 - w1).astype(np.float32)
    mat = np.zeros((out_size, in_size), np.float32)
    mat[np.arange(out_size), i0] += w0
    mat[np.arange(out_size), i1] += w1
    return mat


def resize_matrix_T_np(hi, wi, ho, wo) -> np.ndarray:
    """Transposed Kronecker resize matrix (Hi*Wi, Ho*Wo); row-major flattening
    matches the (h, w) reshape used for the activations."""
    r = np.kron(bilinear_matrix_np(hi, ho), bilinear_matrix_np(wi, wo))
    return np.ascontiguousarray(r.T.astype(np.float32))


# ---------------------------------------------------------------------------
# Wrapper
# ---------------------------------------------------------------------------
@functools.partial(jax.jit,
                   static_argnames=("out_hw_early", "out_hw_late", "cout_tiles"))
def depth_head_forward(feat_early, feat_late, w1, b1, w2, b2,
                       *, out_hw_early, out_hw_late, cout_tiles=2):
    """Fused Pallas forward for both branches of the MiDaS head."""
    N, C, H1, W1 = feat_early.shape
    _, _, H2, W2 = feat_late.shape
    Ho1, Wo1 = out_hw_early
    Ho2, Wo2 = out_hw_late
    Cout = w1.shape[0]
    assert Cout % cout_tiles == 0 and (Cout // cout_tiles) % 8 == 0
    ct = Cout // cout_tiles

    # Channel-major: free reshapes of the NCHW inputs — no transposes.
    x1 = feat_early.reshape(N, C, H1 * W1)
    x2 = feat_late.reshape(N, C, H2 * W2)

    # Resize matrices: built in NumPy at trace time -> compile-time constants.
    rt1 = jnp.asarray(resize_matrix_T_np(H1, W1, Ho1, Wo1))     # (HiWi1, HoWo1)
    rt2 = jnp.asarray(resize_matrix_T_np(H2, W2, Ho2, Wo2))     # (HiWi2, HoWo2)

    wm1 = w1.reshape(Cout, C)                                   # free reshape
    wm2 = w2.reshape(Cout, C)
    bb1 = b1.reshape(Cout, 1)
    bb2 = b2.reshape(Cout, 1)

    flops = 2 * N * Cout * (H1 * W1 * C + Ho1 * Wo1 * H1 * W1
                            + H2 * W2 * C + Ho2 * Wo2 * H2 * W2)
    bytes_accessed = 4 * (x1.size + x2.size + rt1.size + rt2.size
                          + wm1.size + wm2.size + bb1.size + bb2.size
                          + N * Cout * (Ho1 * Wo1 + Ho2 * Wo2))

    out1, out2 = pl.pallas_call(
        _fused_head_kernel,
        out_shape=(
            jax.ShapeDtypeStruct((N, Cout, Ho1 * Wo1), feat_early.dtype),
            jax.ShapeDtypeStruct((N, Cout, Ho2 * Wo2), feat_late.dtype),
        ),
        grid_spec=pltpu.PrefetchScalarGridSpec(
            num_scalar_prefetch=0,
            grid=(N, cout_tiles),
            in_specs=[
                pl.BlockSpec((1, C, H1 * W1), lambda n, c: (n, 0, 0)),
                pl.BlockSpec((1, C, H2 * W2), lambda n, c: (n, 0, 0)),
                pl.BlockSpec((H1 * W1, Ho1 * Wo1), lambda n, c: (0, 0)),
                pl.BlockSpec((H2 * W2, Ho2 * Wo2), lambda n, c: (0, 0)),
                pl.BlockSpec((ct, C), lambda n, c: (c, 0)),
                pl.BlockSpec((ct, C), lambda n, c: (c, 0)),
                pl.BlockSpec((ct, 1), lambda n, c: (c, 0)),
                pl.BlockSpec((ct, 1), lambda n, c: (c, 0)),
            ],
            out_specs=[
                pl.BlockSpec((1, ct, Ho1 * Wo1), lambda n, c: (n, c, 0)),
                pl.BlockSpec((1, ct, Ho2 * Wo2), lambda n, c: (n, c, 0)),
            ],
        ),
        compiler_params=pltpu.CompilerParams(
            dimension_semantics=("parallel", "parallel")),
        cost_estimate=pl.CostEstimate(flops=flops, transcendentals=0,
                                      bytes_accessed=bytes_accessed),
    )(x1, x2, rt1, rt2, wm1, wm2, bb1, bb2)

    # Channel-major outputs reshape straight back to NCHW — no transpose.
    y1 = out1.reshape(N, Cout, Ho1, Wo1)
    y2 = out2.reshape(N, Cout, Ho2, Wo2)
    return y1, y2


# ---------------------------------------------------------------------------
# Pure-JAX f32 reference of the PyTorch order (resize, then 1x1 conv).
# ---------------------------------------------------------------------------
def head_branch_ref(x_nchw, out_hw, weight, bias):
    N, C, Hi, Wi = x_nchw.shape
    Ho, Wo = out_hw
    Cout = weight.shape[0]
    rh = jnp.asarray(bilinear_matrix_np(Hi, Ho))
    rw = jnp.asarray(bilinear_matrix_np(Wi, Wo))
    interp = jnp.einsum("oh,nchw->ncow", rh, x_nchw)
    interp = jnp.einsum("pw,ncow->ncop", rw, interp)
    y = jnp.einsum("ncop,kc->nkop", interp, weight.reshape(Cout, C))
    return y + bias[None, :, None, None]


class DepthAnythingDepthEstimationHeadMiDasPallas:
    """Pallas port of DepthAnythingDepthEstimationHeadMiDas."""

    def __init__(self, key, output_sizes=((16, 16), (8, 8))):
        k1, k2, k3, k4 = jax.random.split(key, 4)
        # Conv2d(256, 128, 1) parameters, deterministic synthetic init.
        self.conv1_w = 0.05 * jax.random.normal(k1, (128, 256, 1, 1), jnp.float32)
        self.conv1_b = 0.05 * jax.random.normal(k2, (128,), jnp.float32)
        self.conv2_w = 0.05 * jax.random.normal(k3, (128, 256, 1, 1), jnp.float32)
        self.conv2_b = 0.05 * jax.random.normal(k4, (128,), jnp.float32)
        self.output_sizes = tuple(tuple(s) for s in output_sizes)

    def __call__(self, hidden_states):
        feat_early = hidden_states[-1]
        feat_late = hidden_states[-2]
        return depth_head_forward(
            feat_early, feat_late,
            self.conv1_w, self.conv1_b, self.conv2_w, self.conv2_b,
            out_hw_early=self.output_sizes[0],
            out_hw_late=self.output_sizes[1])


if __name__ == "__main__":
    key = jax.random.PRNGKey(0)
    kp, ke, kl = jax.random.split(key, 3)

    # Small shapes consistent with the module: channels fixed at 256/128 by the
    # 1x1 convs; small spatial extents and small output sizes.
    feat_early = jax.random.normal(ke, (2, 256, 8, 8), jnp.float32)   # hidden_states[-1]
    feat_late = jax.random.normal(kl, (2, 256, 4, 4), jnp.float32)    # hidden_states[-2]
    hidden_states = [feat_late, feat_early]

    model = DepthAnythingDepthEstimationHeadMiDasPallas(
        kp, output_sizes=((16, 16), (8, 8)))

    out_early, out_late = model(hidden_states)
    jax.block_until_ready((out_early, out_late))

    assert out_early.shape == (2, 128, 16, 16), out_early.shape
    assert out_late.shape == (2, 128, 8, 8), out_late.shape

    # Correctness vs. a pure-f32 reference of the original (resize-then-conv)
    # math.  The conv matmul uses bf16 operands with f32 accumulation (single
    # bf16 rounding end-to-end), so a modest tolerance applies.
    ref_early = head_branch_ref(feat_early, (16, 16), model.conv1_w, model.conv1_b)
    ref_late = head_branch_ref(feat_late, (8, 8), model.conv2_w, model.conv2_b)
    assert jnp.allclose(out_early, ref_early, rtol=2e-2, atol=2e-2), (
        float(jnp.max(jnp.abs(out_early - ref_early))))
    assert jnp.allclose(out_late, ref_late, rtol=2e-2, atol=2e-2), (
        float(jnp.max(jnp.abs(out_late - ref_late))))

    print("KERNEL_OK")
</pallas_src>

<mosaic_0001>
module attributes {stable_mosaic.version = 11 : i64} {
  func.func @_fused_head_kernel(%arg0: i32, %arg1: i32, %arg2: memref<1x256x64xf32, #tpu.memory_space<vmem>>, %arg3: memref<1x256x16xf32, #tpu.memory_space<vmem>>, %arg4: memref<64x256xf32, #tpu.memory_space<vmem>>, %arg5: memref<16x64xf32, #tpu.memory_space<vmem>>, %arg6: memref<64x256xf32, #tpu.memory_space<vmem>>, %arg7: memref<64x256xf32, #tpu.memory_space<vmem>>, %arg8: memref<64x1xf32, #tpu.memory_space<vmem>>, %arg9: memref<64x1xf32, #tpu.memory_space<vmem>>, %arg10: memref<1x64x256xf32, #tpu.memory_space<vmem>>, %arg11: memref<1x64x64xf32, #tpu.memory_space<vmem>>) attributes {dimension_semantics = [#tpu.dimension_semantics<parallel>, #tpu.dimension_semantics<parallel>], iteration_bounds = array<i64: 2, 2>, scalar_prefetch = 0 : i64, scratch_operands = 0 : i64, tpu.core_type = #tpu.core_type<tc>, window_params = [{transform_indices = @transform_0, window_bounds = array<i64: 1, 256, 64>}, {transform_indices = @transform_1, window_bounds = array<i64: 1, 256, 16>}, {pipeline_mode = #tpu.pipeline_mode<synchronous>, transform_indices = @transform_2, window_bounds = array<i64: 64, 256>}, {pipeline_mode = #tpu.pipeline_mode<synchronous>, transform_indices = @transform_3, window_bounds = array<i64: 16, 64>}, {transform_indices = @transform_4, window_bounds = array<i64: 64, 256>}, {transform_indices = @transform_5, window_bounds = array<i64: 64, 256>}, {transform_indices = @transform_6, window_bounds = array<i64: 64, 1>}, {transform_indices = @transform_7, window_bounds = array<i64: 64, 1>}, {transform_indices = @transform_8, window_bounds = array<i64: 1, 64, 256>}, {transform_indices = @transform_9, window_bounds = array<i64: 1, 64, 64>}]} {
    %c0 = arith.constant 0 : index
    %c0_0 = arith.constant 0 : index
    %c0_1 = arith.constant 0 : index
    %0 = vector.load %arg2[%c0, %c0_0, %c0_1] : memref<1x256x64xf32, #tpu.memory_space<vmem>>, vector<1x256x64xf32>
    %1 = vector.shape_cast %0 : vector<1x256x64xf32> to vector<256x64xf32>
    %2 = arith.truncf %1 : vector<256x64xf32> to vector<256x64xbf16>
    %c0_2 = arith.constant 0 : index
    %c0_3 = arith.constant 0 : index
    %3 = vector.load %arg6[%c0_2, %c0_3] : memref<64x256xf32, #tpu.memory_space<vmem>>, vector<64x256xf32>
    %4 = arith.truncf %3 : vector<64x256xf32> to vector<64x256xbf16>
    %cst = arith.constant dense<0.000000e+00> : vector<64x64xf32>
    %5 = tpu.matmul %4, %2, %cst {dimension_numbers = #tpu.dot_dimension_numbers<[1], [0], [0], [1], [0, 0, 1, 1], [], []>} : vector<64x256xbf16>, vector<256x64xbf16>, vector<64x64xf32> -> vector<64x64xf32>
    %c0_4 = arith.constant 0 : index
    %c0_5 = arith.constant 0 : index
    %6 = vector.load %arg4[%c0_4, %c0_5] : memref<64x256xf32, #tpu.memory_space<vmem>>, vector<64x256xf32>
    %cst_6 = arith.constant dense<0.000000e+00> : vector<64x256xf32>
    %7 = tpu.matmul %5, %6, %cst_6 {dimension_numbers = #tpu.dot_dimension_numbers<[1], [0], [0], [1], [0, 0, 1, 1], [], []>} : vector<64x64xf32>, vector<64x256xf32>, vector<64x256xf32> -> vector<64x256xf32>
    %c0_7 = arith.constant 0 : index
    %c0_8 = arith.constant 0 : index
    %8 = vector.load %arg8[%c0_7, %c0_8] : memref<64x1xf32, #tpu.memory_space<vmem>>, vector<64x1xf32>
    %9 = vector.broadcast %8 : vector<64x1xf32> to vector<64x256xf32>
    %10 = arith.addf %7, %9 : vector<64x256xf32>
    %c0_9 = arith.constant 0 : index
    %c0_10 = arith.constant 0 : index
    %c0_11 = arith.constant 0 : index
    %11 = vector.load %arg10[%c0_9, %c0_10, %c0_11] : memref<1x64x256xf32, #tpu.memory_space<vmem>>, vector<1x64x256xf32>
    %12 = vector.shape_cast %11 : vector<1x64x256xf32> to vector<64x256xf32>
    %13 = vector.shape_cast %10 : vector<64x256xf32> to vector<1x64x256xf32>
    tpu.vector_store %arg10[%c0_9, %c0_10, %c0_11], %13 {strides = array<i32>} : memref<1x64x256xf32, #tpu.memory_space<vmem>>, vector<1x64x256xf32>,
    %c0_12 = arith.constant 0 : index
    %c0_13 = arith.constant 0 : index
    %c0_14 = arith.constant 0 : index
    %14 = vector.load %arg3[%c0_12, %c0_13, %c0_14] : memref<1x256x16xf32, #tpu.memory_space<vmem>>, vector<1x256x16xf32>
    %15 = vector.shape_cast %14 : vector<1x256x16xf32> to vector<256x16xf32>
    %16 = arith.truncf %15 : vector<256x16xf32> to vector<256x16xbf16>
    %c0_15 = arith.constant 0 : index
    %c0_16 = arith.constant 0 : index
    %17 = vector.load %arg7[%c0_15, %c0_16] : memref<64x256xf32, #tpu.memory_space<vmem>>, vector<64x256xf32>
    %18 = arith.truncf %17 : vector<64x256xf32> to vector<64x256xbf16>
    %cst_17 = arith.constant dense<0.000000e+00> : vector<64x16xf32>
    %19 = tpu.matmul %18, %16, %cst_17 {dimension_numbers = #tpu.dot_dimension_numbers<[1], [0], [0], [1], [0, 0, 1, 1], [], []>} : vector<64x256xbf16>, vector<256x16xbf16>, vector<64x16xf32> -> vector<64x16xf32>
    %c0_18 = arith.constant 0 : index
    %c0_19 = arith.constant 0 : index
    %20 = vector.load %arg5[%c0_18, %c0_19] : memref<16x64xf32, #tpu.memory_space<vmem>>, vector<16x64xf32>
    %cst_20 = arith.constant dense<0.000000e+00> : vector<64x64xf32>
    %21 = tpu.matmul %19, %20, %cst_20 {dimension_numbers = #tpu.dot_dimension_numbers<[1], [0], [0], [1], [0, 0, 1, 1], [], []>} : vector<64x16xf32>, vector<16x64xf32>, vector<64x64xf32> -> vector<64x64xf32>
    %c0_21 = arith.constant 0 : index
    %c0_22 = arith.constant 0 : index
    %22 = vector.load %arg9[%c0_21, %c0_22] : memref<64x1xf32, #tpu.memory_space<vmem>>, vector<64x1xf32>
    %23 = vector.broadcast %22 : vector<64x1xf32> to vector<64x64xf32>
    %24 = arith.addf %21, %23 : vector<64x64xf32>
    %c0_23 = arith.constant 0 : index
    %c0_24 = arith.constant 0 : index
    %c0_25 = arith.constant 0 : index
    %25 = vector.load %arg11[%c0_23, %c0_24, %c0_25] : memref<1x64x64xf32, #tpu.memory_space<vmem>>, vector<1x64x64xf32>
    %26 = vector.shape_cast %25 : vector<1x64x64xf32> to vector<64x64xf32>
    %27 = vector.shape_cast %24 : vector<64x64xf32> to vector<1x64x64xf32>
    tpu.vector_store %arg11[%c0_23, %c0_24, %c0_25], %27 {strides = array<i32>} : memref<1x64x64xf32, #tpu.memory_space<vmem>>, vector<1x64x64xf32>,
    return
  }
  func.func @transform_0(%arg0: i32, %arg1: i32) -> (i32, i32, i32) {
    %c0_i32 = arith.constant 0 : i32
    %c0_i32_0 = arith.constant 0 : i32
    %c0_i32_1 = arith.constant 0 : i32
    return %arg0, %c0_i32, %c0_i32_0 : i32, i32, i32
  }
  func.func @transform_1(%arg0: i32, %arg1: i32) -> (i32, i32, i32) {
    %c0_i32 = arith.constant 0 : i32
    %c0_i32_0 = arith.constant 0 : i32
    %c0_i32_1 = arith.constant 0 : i32
    return %arg0, %c0_i32, %c0_i32_0 : i32, i32, i32
  }
  func.func @transform_2(%arg0: i32, %arg1: i32) -> (i32, i32) {
    %c0_i32 = arith.constant 0 : i32
    %c0_i32_0 = arith.constant 0 : i32
    %c0_i32_1 = arith.constant 0 : i32
    return %c0_i32, %c0_i32_0 : i32, i32
  }
  func.func @transform_3(%arg0: i32, %arg1: i32) -> (i32, i32) {
    %c0_i32 = arith.constant 0 : i32
    %c0_i32_0 = arith.constant 0 : i32
    %c0_i32_1 = arith.constant 0 : i32
    return %c0_i32, %c0_i32_0 : i32, i32
  }
  func.func @transform_4(%arg0: i32, %arg1: i32) -> (i32, i32) {
    %c0_i32 = arith.constant 0 : i32
    %c0_i32_0 = arith.constant 0 : i32
    return %arg1, %c0_i32 : i32, i32
  }
  func.func @transform_5(%arg0: i32, %arg1: i32) -> (i32, i32) {
    %c0_i32 = arith.constant 0 : i32
    %c0_i32_0 = arith.constant 0 : i32
    return %arg1, %c0_i32 : i32, i32
  }
  func.func @transform_6(%arg0: i32, %arg1: i32) -> (i32, i32) {
    %c0_i32 = arith.constant 0 : i32
    %c0_i32_0 = arith.constant 0 : i32
    return %arg1, %c0_i32 : i32, i32
  }
  func.func @transform_7(%arg0: i32, %arg1: i32) -> (i32, i32) {
    %c0_i32 = arith.constant 0 : i32
    %c0_i32_0 = arith.constant 0 : i32
    return %arg1, %c0_i32 : i32, i32
  }
  func.func @transform_8(%arg0: i32, %arg1: i32) -> (i32, i32, i32) {
    %c0_i32 = arith.constant 0 : i32
    %c0_i32_0 = arith.constant 0 : i32
    return %arg0, %arg1, %c0_i32 : i32, i32, i32
  }
  func.func @transform_9(%arg0: i32, %arg1: i32) -> (i32, i32, i32) {
    %c0_i32 = arith.constant 0 : i32
    %c0_i32_0 = arith.constant 0 : i32
    return %arg0, %arg1, %c0_i32 : i32, i32, i32
  }
}

</mosaic_0001>

<llo_original>
// kernel: depth_head_forward.1
$region0: #{depth_head_forward.1}
  #allocation0 [shape = 'u32[]', space=smem, size = 0x4, offset = 0x4, fixed_abs, tag = 'smem constant byte address 0x4 - core index']
  #allocation1 [shape = 'u32[144,128]{1,0:T(1,128)}', space=vmem, size = 0x12000, scoped, tag = 'internal scratch']
  %s0 = inlined_call_operand.vmem [shape: f32[2,256,64], index: 0, kind: input, shape index: {}]
  %s1 = inlined_call_operand.vmem [shape: f32[2,256,16], index: 1, kind: input, shape index: {}]
  %s2 = inlined_call_operand.vmem [shape: f32[64,256], index: 2, kind: input, shape index: {}]
  %s3 = inlined_call_operand.vmem [shape: f32[16,64], index: 3, kind: input, shape index: {}]
  %s4 = inlined_call_operand.vmem [shape: f32[128,256], index: 4, kind: input, shape index: {}]
  %s5 = inlined_call_operand.vmem [shape: f32[128,256], index: 5, kind: input, shape index: {}]
  %s6 = inlined_call_operand.vmem [shape: f32[128,1], index: 6, kind: input, shape index: {}]
  %s7 = inlined_call_operand.vmem [shape: f32[128,1], index: 7, kind: input, shape index: {}]
  %s8 = inlined_call_operand.vmem [shape: f32[2,128,256], index: 8, kind: output, shape index: {0}]
  %s9 = inlined_call_operand.vmem [shape: f32[2,128,64], index: 9, kind: output, shape index: {1}]
  %10 = xla_tuple %s8, %s9
  %s11 = sld [smem:[#allocation0]]
  $region73: #{depth_head_forward.1} parent=0
    _
  %s13 = ssub.s32 1, %s11
  %s14 = scalar_select 0, %s13, %s11
  loop: start=0, step=1, limit=6
  $region2: #{depth_head_forward.1} parent=0 // loop_pre_header
    _
  $region3: #{depth_head_forward.1} parent=0 // loop_header
    %s16 = sphi 0, %s20
    %p17 = scmp.ge.s32.totalorder %s16, 6
    %s23 = sphi 0, %s35
    %s24 = sphi 0, %s31
    %s25 = sphi 0, %s23
    %s26 = sphi 0, %s24
    %s27 = sphi 0, %s25
    %s28 = sphi 0, %s26
    %s38 = sphi 0, %s40
    %s41 = sphi 0, %s38
    %s42 = sphi 0, %s41
    %s58 = sphi 0, %s42
    %s64 = sphi 0, %s66
    %s67 = sphi 0, %s64
    %s68 = sphi 0, %s67
    %s84 = sphi 0, %s68
    %s88 = sphi 0, %s88
    %s90 = sphi 0, %s88
    %s91 = sphi 0, %s90
    %s105 = sphi 0, %s91
    %s109 = sphi 0, %s109
    %s111 = sphi 0, %s109
    %s112 = sphi 0, %s111
    %s126 = sphi 0, %s112
    %s132 = sphi 0, %s134
    %s135 = sphi 0, %s132
    %s136 = sphi 0, %s135
    %s152 = sphi 0, %s136
    %s158 = sphi 0, %s160
    %s161 = sphi 0, %s158
    %s162 = sphi 0, %s161
    %s178 = sphi 0, %s162
    %s184 = sphi 0, %s186
    %s187 = sphi 0, %s184
    %s188 = sphi 0, %s187
    %s204 = sphi 0, %s188
    %s210 = sphi 0, %s212
    %s213 = sphi 0, %s210
    %s214 = sphi 0, %s213
    %s230 = sphi 0, %s214
    %s238 = sphi 0, %s240
    %s241 = sphi 0, %s238
    %s242 = sphi 0, %s241
    %s258 = sphi 0, %s242
    %s266 = sphi 0, %s268
    %s269 = sphi 0, %s266
    %s270 = sphi 0, %s269
    %s286 = sphi 0, %s270
  $region4: #{depth_head_forward.1} parent=0 // loop_header_branch
    %19 = sbr.rel (%p17) target = $region8
  $region5: #{depth_head_forward.1} parent=0 // loop_body
    %s21 = ssub.s32 %s16, 1
    %s22 = ssub.s32 %s16, 2
    %s29 = sadd.s32 1, %s24
    %p30 = scmp.ge.s32.totalorder %s29, 2
    %s31 = scalar_select %p30, 0, %s29
    %s32 = sadd.s32 1, %s23
    %s33 = scalar_select %p30, %s32, %s23
    %p34 = scmp.ge.s32.totalorder %s33, 2
    %s35 = scalar_select %p34, 0, %s33
    %s36 = ssub.s32 %s23, %s35
    %p37 = scmp.eq.s32.totalorder %s36, 0
    %s39 = sadd.s32 %s38, 1
    %s40 = scalar_select %p37, %s38, %s39
    %p43 = pneg %p37
    %p44 = scmp.eq.s32.totalorder %s16, 3
    %p45 = por %p43, %p44
    %p46 = scmp.ne.s32.totalorder %s38, %s41
    %p47 = scmp.eq.s32.totalorder %s16, 0
    %p48 = por %p46, %p47
    %p49 = scmp.ne.s32.totalorder %s38, %s41
    %p50 = scmp.eq.s32.totalorder %s21, 3
    %p51 = por %p49, %p50
    %p52 = scmp.ne.s32.totalorder %s41, %s42
    %p53 = scmp.eq.s32.totalorder %s21, 0
    %p54 = por %p52, %p53
    %p55 = scmp.ne.s32.totalorder %s41, %s42
    %p56 = scmp.eq.s32.totalorder %s22, 3
    %p57 = por %p55, %p56
    %p59 = scmp.ne.s32.totalorder %s42, %s58
    %p60 = scmp.eq.s32.totalorder %s22, 0
    %p61 = por %p59, %p60
    %s62 = ssub.s32 %s23, %s35
    %p63 = scmp.eq.s32.totalorder %s62, 0
    %s65 = sadd.s32 %s64, 1
    %s66 = scalar_select %p63, %s64, %s65
    %p69 = pneg %p63
    %p70 = scmp.eq.s32.totalorder %s16, 3
    %p71 = por %p69, %p70
    %p72 = scmp.ne.s32.totalorder %s64, %s67
    %p73 = scmp.eq.s32.totalorder %s16, 0
    %p74 = por %p72, %p73
    %p75 = scmp.ne.s32.totalorder %s64, %s67
    %p76 = scmp.eq.s32.totalorder %s21, 3
    %p77 = por %p75, %p76
    %p78 = scmp.ne.s32.totalorder %s67, %s68
    %p79 = scmp.eq.s32.totalorder %s21, 0
    %p80 = por %p78, %p79
    %p81 = scmp.ne.s32.totalorder %s67, %s68
    %p82 = scmp.eq.s32.totalorder %s22, 3
    %p83 = por %p81, %p82
    %p85 = scmp.ne.s32.totalorder %s68, %s84
    %p86 = scmp.eq.s32.totalorder %s22, 0
    %p87 = por %p85, %p86
    %s89 = sadd.s32 %s88, 1
    %p92 = scmp.eq.s32.totalorder %s16, 3
    %p93 = scmp.ne.s32.totalorder %s88, %s90
    %p94 = scmp.eq.s32.totalorder %s16, 0
    %p95 = por %p93, %p94
    %p96 = scmp.ne.s32.totalorder %s88, %s90
    %p97 = scmp.eq.s32.totalorder %s21, 3
    %p98 = por %p96, %p97
    %p99 = scmp.ne.s32.totalorder %s90, %s91
    %p100 = scmp.eq.s32.totalorder %s21, 0
    %p101 = por %p99, %p100
    %p102 = scmp.ne.s32.totalorder %s90, %s91
    %p103 = scmp.eq.s32.totalorder %s22, 3
    %p104 = por %p102, %p103
    %p106 = scmp.ne.s32.totalorder %s91, %s105
    %p107 = scmp.eq.s32.totalorder %s22, 0
    %p108 = por %p106, %p107
    %s110 = sadd.s32 %s109, 1
    %p113 = scmp.eq.s32.totalorder %s16, 3
    %p114 = scmp.ne.s32.totalorder %s109, %s111
    %p115 = scmp.eq.s32.totalorder %s16, 0
    %p116 = por %p114, %p115
    %p117 = scmp.ne.s32.totalorder %s109, %s111
    %p118 = scmp.eq.s32.totalorder %s21, 3
    %p119 = por %p117, %p118
    %p120 = scmp.ne.s32.totalorder %s111, %s112
    %p121 = scmp.eq.s32.totalorder %s21, 0
    %p122 = por %p120, %p121
    %p123 = scmp.ne.s32.totalorder %s111, %s112
    %p124 = scmp.eq.s32.totalorder %s22, 3
    %p125 = por %p123, %p124
    %p127 = scmp.ne.s32.totalorder %s112, %s126
    %p128 = scmp.eq.s32.totalorder %s22, 0
    %p129 = por %p127, %p128
    %s130 = ssub.s32 %s24, %s31
    %p131 = scmp.eq.s32.totalorder %s130, 0
    %s133 = sadd.s32 %s132, 1
    %s134 = scalar_select %p131, %s132, %s133
    %p137 = pneg %p131
    %p138 = scmp.eq.s32.totalorder %s16, 3
    %p139 = por %p137, %p138
    %p140 = scmp.ne.s32.totalorder %s132, %s135
    %p141 = scmp.eq.s32.totalorder %s16, 0
    %p142 = por %p140, %p141
    %p143 = scmp.ne.s32.totalorder %s132, %s135
    %p144 = scmp.eq.s32.totalorder %s21, 3
    %p145 = por %p143, %p144
    %p146 = scmp.ne.s32.totalorder %s135, %s136
    %p147 = scmp.eq.s32.totalorder %s21, 0
    %p148 = por %p146, %p147
    %p149 = scmp.ne.s32.totalorder %s135, %s136
    %p150 = scmp.eq.s32.totalorder %s22, 3
    %p151 = por %p149, %p150
    %p153 = scmp.ne.s32.totalorder %s136, %s152
    %p154 = scmp.eq.s32.totalorder %s22, 0
    %p155 = por %p153, %p154
    %s156 = ssub.s32 %s24, %s31
    %p157 = scmp.eq.s32.totalorder %s156, 0
    %s159 = sadd.s32 %s158, 1
    %s160 = scalar_select %p157, %s158, %s159
    %p163 = pneg %p157
    %p164 = scmp.eq.s32.totalorder %s16, 3
    %p165 = por %p163, %p164
    %p166 = scmp.ne.s32.totalorder %s158, %s161
    %p167 = scmp.eq.s32.totalorder %s16, 0
    %p168 = por %p166, %p167
    %p169 = scmp.ne.s32.totalorder %s158, %s161
    %p170 = scmp.eq.s32.totalorder %s21, 3
    %p171 = por %p169, %p170
    %p172 = scmp.ne.s32.totalorder %s161, %s162
    %p173 = scmp.eq.s32.totalorder %s21, 0
    %p174 = por %p172, %p173
    %p175 = scmp.ne.s32.totalorder %s161, %s162
    %p176 = scmp.eq.s32.totalorder %s22, 3
    %p177 = por %p175, %p176
    %p179 = scmp.ne.s32.totalorder %s162, %s178
    %p180 = scmp.eq.s32.totalorder %s22, 0
    %p181 = por %p179, %p180
    %s182 = ssub.s32 %s24, %s31
    %p183 = scmp.eq.s32.totalorder %s182, 0
    %s185 = sadd.s32 %s184, 1
    %s186 = scalar_select %p183, %s184, %s185
    %p189 = pneg %p183
    %p190 = scmp.eq.s32.totalorder %s16, 3
    %p191 = por %p189, %p190
    %p192 = scmp.ne.s32.totalorder %s184, %s187
    %p193 = scmp.eq.s32.totalorder %s16, 0
    %p194 = por %p192, %p193
    %p195 = scmp.ne.s32.totalorder %s184, %s187
    %p196 = scmp.eq.s32.totalorder %s21, 3
    %p197 = por %p195, %p196
    %p198 = scmp.ne.s32.totalorder %s187, %s188
    %p199 = scmp.eq.s32.totalorder %s21, 0
    %p200 = por %p198, %p199
    %p201 = scmp.ne.s32.totalorder %s187, %s188
    %p202 = scmp.eq.s32.totalorder %s22, 3
    %p203 = por %p201, %p202
    %p205 = scmp.ne.s32.totalorder %s188, %s204
    %p206 = scmp.eq.s32.totalorder %s22, 0
    %p207 = por %p205, %p206
    %s208 = ssub.s32 %s24, %s31
    %p209 = scmp.eq.s32.totalorder %s208, 0
    %s211 = sadd.s32 %s210, 1
    %s212 = scalar_select %p209, %s210, %s211
    %p215 = pneg %p209
    %p216 = scmp.eq.s32.totalorder %s16, 3
    %p217 = por %p215, %p216
    %p218 = scmp.ne.s32.totalorder %s210, %s213
    %p219 = scmp.eq.s32.totalorder %s16, 0
    %p220 = por %p218, %p219
    %p221 = scmp.ne.s32.totalorder %s210, %s213
    %p222 = scmp.eq.s32.totalorder %s21, 3
    %p223 = por %p221, %p222
    %p224 = scmp.ne.s32.totalorder %s213, %s214
    %p225 = scmp.eq.s32.totalorder %s21, 0
    %p226 = por %p224, %p225
    %p227 = scmp.ne.s32.totalorder %s213, %s214
    %p228 = scmp.eq.s32.totalorder %s22, 3
    %p229 = por %p227, %p228
    %p231 = scmp.ne.s32.totalorder %s214, %s230
    %p232 = scmp.eq.s32.totalorder %s22, 0
    %p233 = por %p231, %p232
    %s234 = ssub.s32 %s23, %s35
    %s235 = ssub.s32 %s24, %s31
    %s236 = sor.u32 %s234, %s235
    %p237 = scmp.eq.s32.totalorder %s236, 0
    %s239 = sadd.s32 %s238, 1
    %s240 = scalar_select %p237, %s238, %s239
    %p243 = pneg %p237
    %p244 = scmp.eq.s32.totalorder %s16, 3
    %p245 = por %p243, %p244
    %p246 = scmp.ne.s32.totalorder %s238, %s241
    %p247 = scmp.eq.s32.totalorder %s16, 0
    %p248 = por %p246, %p247
    %p249 = scmp.ne.s32.totalorder %s238, %s241
    %p250 = scmp.eq.s32.totalorder %s21, 3
    %p251 = por %p249, %p250
    %p252 = scmp.ne.s32.totalorder %s241, %s242
    %p253 = scmp.eq.s32.totalorder %s21, 0
    %p254 = por %p252, %p253
    %p255 = scmp.ne.s32.totalorder %s241, %s242
    %p256 = scmp.eq.s32.totalorder %s22, 3
    %p257 = por %p255, %p256
    %p259 = scmp.ne.s32.totalorder %s242, %s258
    %p260 = scmp.eq.s32.totalorder %s22, 0
    %p261 = por %p259, %p260
    %s262 = ssub.s32 %s23, %s35
    %s263 = ssub.s32 %s24, %s31
    %s264 = sor.u32 %s262, %s263
    %p265 = scmp.eq.s32.totalorder %s264, 0
    %s267 = sadd.s32 %s266, 1
    %s268 = scalar_select %p265, %s266, %s267
    %p271 = pneg %p265
    %p272 = scmp.eq.s32.totalorder %s16, 3
    %p273 = por %p271, %p272
    %p274 = scmp.ne.s32.totalorder %s266, %s269
    %p275 = scmp.eq.s32.totalorder %s16, 0
    %p276 = por %p274, %p275
    %p277 = scmp.ne.s32.totalorder %s266, %s269
    %p278 = scmp.eq.s32.totalorder %s21, 3
    %p279 = por %p277, %p278
    %p280 = scmp.ne.s32.totalorder %s269, %s270
    %p281 = scmp.eq.s32.totalorder %s21, 0
    %p282 = por %p280, %p281
    %p283 = scmp.ne.s32.totalorder %s269, %s270
    %p284 = scmp.eq.s32.totalorder %s22, 3
    %p285 = por %p283, %p284
    %p287 = scmp.ne.s32.totalorder %s270, %s286
    %p288 = scmp.eq.s32.totalorder %s22, 0
    %p289 = por %p287, %p288
    %p290 = scmp.le.s32.totalorder 1, %s16
    %p291 = scmp.lt.s32.totalorder %s16, 5
    %p292 = pnand %p290, %p291
    %p293 = pneg %p292
    // Predicated region
    $region9: #{depth_head_forward.1} parent=5 // pred_check
      _
    $region10: #{depth_head_forward.1} parent=5 // pred_check_branch
      %295 = sbr.rel (%p292) target = $region12
    $region11: #{depth_head_forward.1} parent=5 // pred_region
      %s296 = ssub.s32 %s16, 1
      // Predicated region
      $region13: #{depth_head_forward.1} parent=11 // pred_check
        %p297 = pneg %p101
      $region14: #{depth_head_forward.1} parent=11 // pred_check_branch
        %299 = sbr.rel (%p297) target = $region16
      $region15: #{depth_head_forward.1} parent=11 // pred_region
        _
      $region16: #{depth_head_forward.1} parent=11 // pred_fallthru
        _
      // Predicated region
      $region17: #{depth_head_forward.1} parent=11 // pred_check
        %p300 = pneg %p122
      $region18: #{depth_head_forward.1} parent=11 // pred_check_branch
        %302 = sbr.rel (%p300) target = $region20
      $region19: #{depth_head_forward.1} parent=11 // pred_region
        _
      $region20: #{depth_head_forward.1} parent=11 // pred_fallthru
        _
    $region12: #{depth_head_forward.1} parent=5 // pred_fallthru
      _
    %p303 = scmp.lt.s32.totalorder %s16, 4
    // Predicated region
    $region21: #{depth_head_forward.1} parent=5 // pred_check
      %p304 = pneg %p303
    $region22: #{depth_head_forward.1} parent=5 // pred_check_branch
      %306 = sbr.rel (%p304) target = $region24
    $region23: #{depth_head_forward.1} parent=5 // pred_region
      // Predicated region
      $region25: #{depth_head_forward.1} parent=23 // pred_check
        %p307 = pneg %p48
      $region26: #{depth_head_forward.1} parent=23 // pred_check_branch
        %309 = sbr.rel (%p307) target = $region28
      $region27: #{depth_head_forward.1} parent=23 // pred_region
        %p310 = scmp.lt.s32.totalorder %s23, 1
        %s311 = scalar_select %p310, %s23, 1
        %s312 = smul.addr %s311, 32
        %s313 = smul.addr %s312, 8
        %s314 = scalar_lea.vmem %s0, %s313
      $region28: #{depth_head_forward.1} parent=23 // pred_fallthru
        _
      // Predicated region
      $region29: #{depth_head_forward.1} parent=23 // pred_check
        %p315 = pneg %p74
      $region30: #{depth_head_forward.1} parent=23 // pred_check_branch
        %317 = sbr.rel (%p315) target = $region32
      $region31: #{depth_head_forward.1} parent=23 // pred_region
        %p318 = scmp.lt.s32.totalorder %s23, 1
        %s319 = scalar_select %p318, %s23, 1
        %s320 = smul.addr %s319, 32
        %s321 = smul.addr %s320, 8
        %s322 = scalar_lea.vmem %s1, %s321
      $region32: #{depth_head_forward.1} parent=23 // pred_fallthru
        _
      // Predicated region
      $region33: #{depth_head_forward.1} parent=23 // pred_check
        %p323 = pneg %p142
      $region34: #{depth_head_forward.1} parent=23 // pred_check_branch
        %325 = sbr.rel (%p323) target = $region36
      $region35: #{depth_head_forward.1} parent=23 // pred_region
        %s326 = smul.u32 8, %s24
        %p327 = scmp.lt.s32.totalorder %s326, 15
        %s328 = scalar_select %p327, %s326, 15
        %s329 = smul.addr %s328, 2
        %s330 = smul.addr %s329, 8
        %s331 = scalar_lea.vmem %s4, %s330
        %s332 = smul.u32 8, %s24
      $region36: #{depth_head_forward.1} parent=23 // pred_fallthru
        _
      // Predicated region
      $region37: #{depth_head_forward.1} parent=23 // pred_check
        %p333 = pneg %p168
      $region38: #{depth_head_forward.1} parent=23 // pred_check_branch
        %335 = sbr.rel (%p333) target = $region40
      $region39: #{depth_head_forward.1} parent=23 // pred_region
        %s336 = smul.u32 8, %s24
        %p337 = scmp.lt.s32.totalorder %s336, 15
        %s338 = scalar_select %p337, %s336, 15
        %s339 = smul.addr %s338, 2
        %s340 = smul.addr %s339, 8
        %s341 = scalar_lea.vmem %s5, %s340
        %s342 = smul.u32 8, %s24
      $region40: #{depth_head_forward.1} parent=23 // pred_fallthru
        _
      // Predicated region
      $region41: #{depth_head_forward.1} parent=23 // pred_check
        %p343 = pneg %p194
      $region42: #{depth_head_forward.1} parent=23 // pred_check_branch
        %345 = sbr.rel (%p343) target = $region44
      $region43: #{depth_head_forward.1} parent=23 // pred_region
        %s346 = smul.u32 8, %s24
        %p347 = scmp.lt.s32.totalorder %s346, 15
        %s348 = scalar_select %p347, %s346, 15
        %s349 = smul.addr %s348, 8
        %s350 = scalar_lea.vmem %s6, %s349
        %s351 = smul.u32 8, %s24
      $region44: #{depth_head_forward.1} parent=23 // pred_fallthru
        _
      // Predicated region
      $region45: #{depth_head_forward.1} parent=23 // pred_check
        %p352 = pneg %p220
      $region46: #{depth_head_forward.1} parent=23 // pred_check_branch
        %354 = sbr.rel (%p352) target = $region48
      $region47: #{depth_head_forward.1} parent=23 // pred_region
        %s355 = smul.u32 8, %s24
        %p356 = scmp.lt.s32.totalorder %s355, 15
        %s357 = scalar_select %p356, %s355, 15
        %s358 = smul.addr %s357, 8
        %s359 = scalar_lea.vmem %s7, %s358
        %s360 = smul.u32 8, %s24
      $region48: #{depth_head_forward.1} parent=23 // pred_fallthru
        _
    $region24: #{depth_head_forward.1} parent=5 // pred_fallthru
      _
    %p361 = scmp.le.s32.totalorder 1, %s16
    %p362 = scmp.lt.s32.totalorder %s16, 5
    %p363 = pnand %p361, %p362
    %p364 = pneg %p363
    // Predicated region
    $region49: #{depth_head_forward.1} parent=5 // pred_check
      _
    $region50: #{depth_head_forward.1} parent=5 // pred_check_branch
      %366 = sbr.rel (%p363) target = $region52
    $region51: #{depth_head_forward.1} parent=5 // pred_region
      %s367 = ssub.s32 %s16, 1
      %p368 = scmp.lt.s32.totalorder %s25, 1
      %s369 = scalar_select %p368, %s25, 1
      %s370 = smul.addr %s369, 32
      %s371 = smul.addr %s370, 8
      %s372 = scalar_lea.vmem %s0, %s371
      %p373 = pneg %p54
      %p374 = pneg %p51
      %p375 = scmp.lt.s32.totalorder %s25, 1
      %s376 = scalar_select %p375, %s25, 1
      %s377 = smul.addr %s376, 32
      %s378 = smul.addr %s377, 8
      %s379 = scalar_lea.vmem %s1, %s378
      %p380 = pneg %p80
      %p381 = pneg %p77
      %p382 = pneg %p101
      %p383 = pneg %p98
      %p384 = pneg %p122
      %p385 = pneg %p119
      %s386 = smul.u32 8, %s26
      %p387 = scmp.lt.s32.totalorder %s386, 15
      %s388 = scalar_select %p387, %s386, 15
      %s389 = smul.addr %s388, 2
      %s390 = smul.addr %s389, 8
      %s391 = scalar_lea.vmem %s4, %s390
      %p392 = pneg %p148
      %p393 = pneg %p145
      %s394 = smul.u32 8, %s26
      %p395 = scmp.lt.s32.totalorder %s394, 15
      %s396 = scalar_select %p395, %s394, 15
      %s397 = smul.addr %s396, 2
      %s398 = smul.addr %s397, 8
      %s399 = scalar_lea.vmem %s5, %s398
      %p400 = pneg %p174
      %p401 = pneg %p171
      %s402 = smul.u32 8, %s26
      %p403 = scmp.lt.s32.totalorder %s402, 15
      %s404 = scalar_select %p403, %s402, 15
      %s405 = smul.addr %s404, 8
      %s406 = scalar_lea.vmem %s6, %s405
      %p407 = pneg %p200
      %p408 = pneg %p197
      %s409 = smul.u32 8, %s26
      %p410 = scmp.lt.s32.totalorder %s409, 15
      %s411 = scalar_select %p410, %s409, 15
      %s412 = smul.addr %s411, 8
      %s413 = scalar_lea.vmem %s7, %s412
      %p414 = pneg %p226
      %p415 = pneg %p223
      %p416 = pneg %p254
      %p417 = pneg %p251
      %s418 = smul.u32 8, %s26
      %p419 = scmp.lt.s32.totalorder %s25, 1
      %s420 = scalar_select %p419, %s25, 1
      %p421 = scmp.lt.s32.totalorder %s418, 15
      %s422 = scalar_select %p421, %s418, 15
      %s423 = smul.addr %s422, 2
      %s424 = smul.addr %s420, 32
      %s425 = sadd.s32 %s423, %s424
      %s426 = smul.addr %s425, 8
      %s427 = scalar_lea.vmem %s8, %s426
      %p428 = pneg %p282
      %p429 = pneg %p279
      %s430 = smul.u32 8, %s26
      %p431 = scmp.lt.s32.totalorder %s25, 1
      %s432 = scalar_select %p431, %s25, 1
      %p433 = scmp.lt.s32.totalorder %s430, 15
      %s434 = scalar_select %p433, %s430, 15
      %s435 = smul.addr %s432, 16
      %s436 = sadd.s32 %s434, %s435
      %s437 = smul.addr %s436, 8
      %s438 = scalar_lea.vmem %s9, %s437
      %p439 = scmp.lt.s32.totalorder %s25, 1
      %s440 = scalar_select %p439, %s25, 1
      %s441 = smul.addr %s440, 32
      %s442 = smul.addr %s441, 8
      %s443 = scalar_lea.vmem %s0, %s442
      %p444 = scmp.lt.s32.totalorder %s25, 1
      %s445 = scalar_select %p444, %s25, 1
      %s446 = smul.addr %s445, 32
      %s447 = smul.addr %s446, 8
      %s448 = scalar_lea.vmem %s1, %s447
      %s449 = smul.u32 8, %s26
      %p450 = scmp.lt.s32.totalorder %s449, 15
      %s451 = scalar_select %p450, %s449, 15
      %s452 = smul.addr %s451, 2
      %s453 = smul.addr %s452, 8
      %s454 = scalar_lea.vmem %s4, %s453
      %s455 = smul.u32 8, %s26
      %s456 = smul.u32 8, %s26
      %p457 = scmp.lt.s32.totalorder %s456, 15
      %s458 = scalar_select %p457, %s456, 15
      %s459 = smul.addr %s458, 2
      %s460 = smul.addr %s459, 8
      %s461 = scalar_lea.vmem %s5, %s460
      %s462 = smul.u32 8, %s26
      %s463 = smul.u32 8, %s26
      %p464 = scmp.lt.s32.totalorder %s463, 15
      %s465 = scalar_select %p464, %s463, 15
      %s466 = smul.addr %s465, 8
      %s467 = scalar_lea.vmem %s6, %s466
      %s468 = smul.u32 8, %s26
      %s469 = smul.u32 8, %s26
      %p470 = scmp.lt.s32.totalorder %s469, 15
      %s471 = scalar_select %p470, %s469, 15
      %s472 = smul.addr %s471, 8
      %s473 = scalar_lea.vmem %s7, %s472
      %s474 = smul.u32 8, %s26
      %s475 = smul.u32 8, %s26
      %p476 = scmp.lt.s32.totalorder %s25, 1
      %s477 = scalar_select %p476, %s25, 1
      %p478 = scmp.lt.s32.totalorder %s475, 15
      %s479 = scalar_select %p478, %s475, 15
      %s480 = smul.addr %s479, 2
      %s481 = smul.addr %s477, 32
      %s482 = sadd.s32 %s480, %s481
      %s483 = smul.addr %s482, 8
      %s484 = scalar_lea.vmem %s8, %s483
      %s485 = smul.u32 8, %s26
      %s486 = smul.u32 8, %s26
      %p487 = scmp.lt.s32.totalorder %s25, 1
      %s488 = scalar_select %p487, %s25, 1
      %p489 = scmp.lt.s32.totalorder %s486, 15
      %s490 = scalar_select %p489, %s486, 15
      %s491 = smul.addr %s488, 16
      %s492 = sadd.s32 %s490, %s491
      %s493 = smul.addr %s492, 8
      %s494 = scalar_lea.vmem %s9, %s493
      %s495 = smul.u32 8, %s26
      %v497 = vld [vmem:[%s443] sm:$0xff]
      %v498 = vld [vmem:[%s443 + $0x8] sm:$0xff]
      %v499 = vld [vmem:[%s443 + $0x10] sm:$0xff]
      %v500 = vld [vmem:[%s443 + $0x18] sm:$0xff]
      %v501 = vld [vmem:[%s443 + $0x20] sm:$0xff]
      %v502 = vld [vmem:[%s443 + $0x28] sm:$0xff]
      %v503 = vld [vmem:[%s443 + $0x30] sm:$0xff]
      %v504 = vld [vmem:[%s443 + $0x38] sm:$0xff]
      %v505 = vld [vmem:[%s443 + $0x40] sm:$0xff]
      %v506 = vld [vmem:[%s443 + $0x48] sm:$0xff]
      %v507 = vld [vmem:[%s443 + $0x50] sm:$0xff]
      %v508 = vld [vmem:[%s443 + $0x58] sm:$0xff]
      %v509 = vld [vmem:[%s443 + $0x60] sm:$0xff]
      %v510 = vld [vmem:[%s443 + $0x68] sm:$0xff]
      %v511 = vld [vmem:[%s443 + $0x70] sm:$0xff]
      %v512 = vld [vmem:[%s443 + $0x78] sm:$0xff]
      %v513 = vld [vmem:[%s443 + $0x80] sm:$0xff]
      %v514 = vld [vmem:[%s443 + $0x88] sm:$0xff]
      %v515 = vld [vmem:[%s443 + $0x90] sm:$0xff]
      %v516 = vld [vmem:[%s443 + $0x98] sm:$0xff]
      %v517 = vld [vmem:[%s443 + $0xa0] sm:$0xff]
      %v518 = vld [vmem:[%s443 + $0xa8] sm:$0xff]
      %v519 = vld [vmem:[%s443 + $0xb0] sm:$0xff]
      %v520 = vld [vmem:[%s443 + $0xb8] sm:$0xff]
      %v521 = vld [vmem:[%s443 + $0xc0] sm:$0xff]
      %v522 = vld [vmem:[%s443 + $0xc8] sm:$0xff]
      %v523 = vld [vmem:[%s443 + $0xd0] sm:$0xff]
      %v524 = vld [vmem:[%s443 + $0xd8] sm:$0xff]
      %v525 = vld [vmem:[%s443 + $0xe0] sm:$0xff]
      %v526 = vld [vmem:[%s443 + $0xe8] sm:$0xff]
      %v527 = vld [vmem:[%s443 + $0xf0] sm:$0xff]
      %v528 = vld [vmem:[%s443 + $0xf8] sm:$0xff]
      %v529 = vpack.c.bf16 %v498, %v497
      %v530 = vpack.c.bf16 %v500, %v499
      %v531 = vpack.c.bf16 %v502, %v501
      %v532 = vpack.c.bf16 %v504, %v503
      %v533 = vpack.c.bf16 %v506, %v505
      %v534 = vpack.c.bf16 %v508, %v507
      %v535 = vpack.c.bf16 %v510, %v509
      %v536 = vpack.c.bf16 %v512, %v511
      %v537 = vpack.c.bf16 %v514, %v513
      %v538 = vpack.c.bf16 %v516, %v515
      %v539 = vpack.c.bf16 %v518, %v517
      %v540 = vpack.c.bf16 %v520, %v519
      %v541 = vpack.c.bf16 %v522, %v521
      %v542 = vpack.c.bf16 %v524, %v523
      %v543 = vpack.c.bf16 %v526, %v525
      %v544 = vpack.c.bf16 %v528, %v527
      %v545 = vld [vmem:[%s454] sm:$0xff]
      %v546 = vld [vmem:[%s454 + $0x8] sm:$0xff]
      %v547 = vld [vmem:[%s454 + $0x10] sm:$0xff]
      %v548 = vld [vmem:[%s454 + $0x18] sm:$0xff]
      %v549 = vld [vmem:[%s454 + $0x20] sm:$0xff]
      %v550 = vld [vmem:[%s454 + $0x28] sm:$0xff]
      %v551 = vld [vmem:[%s454 + $0x30] sm:$0xff]
      %v552 = vld [vmem:[%s454 + $0x38] sm:$0xff]
      %v553 = vld [vmem:[%s454 + $0x40] sm:$0xff]
      %v554 = vld [vmem:[%s454 + $0x48] sm:$0xff]
      %v555 = vld [vmem:[%s454 + $0x50] sm:$0xff]
      %v556 = vld [vmem:[%s454 + $0x58] sm:$0xff]
      %v557 = vld [vmem:[%s454 + $0x60] sm:$0xff]
      %v558 = vld [vmem:[%s454 + $0x68] sm:$0xff]
      %v559 = vld [vmem:[%s454 + $0x70] sm:$0xff]
      %v560 = vld [vmem:[%s454 + $0x78] sm:$0xff]
      %v561 = vpack.c.bf16 %v547, %v545
      %v562 = vpack.c.bf16 %v548, %v546
      %v563 = vpack.c.bf16 %v551, %v549
      %v564 = vpack.c.bf16 %v552, %v550
      %v565 = vpack.c.bf16 %v555, %v553
      %v566 = vpack.c.bf16 %v556, %v554
      %v567 = vpack.c.bf16 %v559, %v557
      %v568 = vpack.c.bf16 %v560, %v558
      %569 = vmatprep.subr.bf16.mxu0 0
      %570 = vmatpush1.bf16.msra.mxu0 %v529
      %571 = vmatprep.subr.bf16.mxu0 0
      %572 = vmatpush1.bf16.msra.mxu0 %v530
      %573 = vmatprep.subr.bf16.mxu0 0
      %574 = vmatpush1.bf16.msra.mxu0 %v531
      %575 = vmatprep.subr.bf16.mxu0 0
      %576 = vmatpush1.bf16.msra.mxu0 %v532
      %577 = vmatprep.subr.bf16.mxu0 0
      %578 = vmatpush1.bf16.msra.mxu0 %v533
      %579 = vmatprep.subr.bf16.mxu0 0
      %580 = vmatpush1.bf16.msra.mxu0 %v534
      %581 = vmatprep.subr.bf16.mxu0 0
      %582 = vmatpush1.bf16.msra.mxu0 %v535
      %583 = vmatprep.subr.bf16.mxu0 0
      %584 = vmatpush1.bf16.msra.mxu0 %v536
      %585 = vmatprep.subr.bf16.mxu0 0
      %586 = vmatpush1.bf16.msra.mxu0 %v537
      %587 = vmatprep.subr.bf16.mxu0 0
      %588 = vmatpush1.bf16.msra.mxu0 %v538
      %589 = vmatprep.subr.bf16.mxu0 0
      %590 = vmatpush1.bf16.msra.mxu0 %v539
      %591 = vmatprep.subr.bf16.mxu0 0
      %592 = vmatpush1.bf16.msra.mxu0 %v540
      %593 = vmatprep.subr.bf16.mxu0 0
      %594 = vmatpush1.bf16.msra.mxu0 %v541
      %595 = vmatprep.subr.bf16.mxu0 0
      %596 = vmatpush1.bf16.msra.mxu0 %v542
      %597 = vmatprep.subr.bf16.mxu0 0
      %598 = vmatpush1.bf16.msra.mxu0 %v543
      %599 = vmatprep.subr.bf16.mxu0 0
      %600 = vmatpush1.bf16.msra.mxu0 %v544
      %601 = vmatprep.mubr.bf16.mxu0 %v562
      %602 = vmatmul.mubr.bf16.gmra.mrb[0].mxu0 %v561
      %v603 = vpop.f32.mrb[0].mxu0
      %v604 = vadd.f32 0.0, %v603
      %v605 = vpop.f32.mrb[0].mxu0
      %v606 = vpop.f32.mrb[0].mxu0
      %v607 = vadd.f32 0.0, %v606
      %v608 = vpop.f32.mrb[0].mxu0
      %609 = vmatprep.mubr.bf16.mxu0 %v564
      %610 = vmatmul.mubr.bf16.gmra.mrb[0].mxu0 %v563
      %v611 = vpop.f32.mrb[0].mxu0
      %v612 = vadd.f32 0.0, %v611
      %v613 = vpop.f32.mrb[0].mxu0
      %v614 = vpop.f32.mrb[0].mxu0
      %v615 = vadd.f32 0.0, %v614
      %v616 = vpop.f32.mrb[0].mxu0
      %617 = vmatprep.mubr.bf16.mxu0 %v566
      %618 = vmatmul.mubr.bf16.gmra.mrb[0].mxu0 %v565
      %v619 = vpop.f32.mrb[0].mxu0
      %v620 = vadd.f32 0.0, %v619
      %v621 = vpop.f32.mrb[0].mxu0
      %v622 = vpop.f32.mrb[0].mxu0
      %v623 = vadd.f32 0.0, %v622
      %v624 = vpop.f32.mrb[0].mxu0
      %625 = vmatprep.mubr.bf16.mxu0 %v568
      %626 = vmatmul.mubr.bf16.gmra.mrb[0].mxu0 %v567
      %v627 = vpop.f32.mrb[0].mxu0
      %v628 = vadd.f32 0.0, %v627
      %v629 = vpop.f32.mrb[0].mxu0
      %v630 = vpop.f32.mrb[0].mxu0
      %v631 = vadd.f32 0.0, %v630
      %v632 = vpop.f32.mrb[0].mxu0
      %633 = vdwg.mxu0
      %v634 = vld [vmem:[%s2] sm:$0xff]
      %v635 = vld [vmem:[%s2 + $0x8] sm:$0xff]
      %v636 = vld [vmem:[%s2 + $0x10] sm:$0xff]
      %v637 = vld [vmem:[%s2 + $0x18] sm:$0xff]
      %v638 = vld [vmem:[%s2 + $0x20] sm:$0xff]
      %v639 = vld [vmem:[%s2 + $0x28] sm:$0xff]
      %v640 = vld [vmem:[%s2 + $0x30] sm:$0xff]
      %v641 = vld [vmem:[%s2 + $0x38] sm:$0xff]
      %v642 = vld [vmem:[%s2 + $0x40] sm:$0xff]
      %v643 = vld [vmem:[%s2 + $0x48] sm:$0xff]
      %v644 = vld [vmem:[%s2 + $0x50] sm:$0xff]
      %v645 = vld [vmem:[%s2 + $0x58] sm:$0xff]
      %v646 = vld [vmem:[%s2 + $0x60] sm:$0xff]
      %v647 = vld [vmem:[%s2 + $0x68] sm:$0xff]
      %v648 = vld [vmem:[%s2 + $0x70] sm:$0xff]
      %v649 = vld [vmem:[%s2 + $0x78] sm:$0xff]
      %v650 = vld [vmem:[%s467] sm:$0xff]
      %v651 = vld [vmem:[%s467 + $0x8] sm:$0xff]
      %v652 = vld [vmem:[%s467 + $0x10] sm:$0xff]
      %v653 = vld [vmem:[%s467 + $0x18] sm:$0xff]
      %v654 = vld [vmem:[%s467 + $0x20] sm:$0xff]
      %v655 = vld [vmem:[%s467 + $0x28] sm:$0xff]
      %v656 = vld [vmem:[%s467 + $0x30] sm:$0xff]
      %v657 = vld [vmem:[%s467 + $0x38] sm:$0xff]
      %659 = vset.pattern.permute.xlu0 0
      %660 = vperm.xlu0 %659, %v650
      %v661 = vpop.permute.xlu0 %660
      %664 = vset.pattern.permute.xlu0 0
      %665 = vperm.xlu0 %664, %v651
      %v666 = vpop.permute.xlu0 %665
      %669 = vset.pattern.permute.xlu0 0
      %670 = vperm.xlu0 %669, %v652
      %v671 = vpop.permute.xlu0 %670
      %674 = vset.pattern.permute.xlu0 0
      %675 = vperm.xlu0 %674, %v653
      %v676 = vpop.permute.xlu0 %675
      %679 = vset.pattern.permute.xlu0 0
      %680 = vperm.xlu0 %679, %v654
      %v681 = vpop.permute.xlu0 %680
      %684 = vset.pattern.permute.xlu0 0
      %685 = vperm.xlu0 %684, %v655
      %v686 = vpop.permute.xlu0 %685
      %689 = vset.pattern.permute.xlu0 0
      %690 = vperm.xlu0 %689, %v656
      %v691 = vpop.permute.xlu0 %690
      %694 = vset.pattern.permute.xlu0 0
      %695 = vperm.xlu0 %694, %v657
      %v696 = vpop.permute.xlu0 %695
      %vm698 = vcmask 523264
      %v700 = vsel %vm698, %v604, 0
      %v703 = vsel %vm698, %v607, 0
      %v706 = vsel %vm698, %v612, 0
      %v709 = vsel %vm698, %v615, 0
      %v712 = vsel %vm698, %v620, 0
      %v715 = vsel %vm698, %v623, 0
      %v718 = vsel %vm698, %v628, 0
      %v721 = vsel %vm698, %v631, 0
      %723 = vmatprep.subr.mxu0 %v635
      %724 = vmatpush1.msra.mxu0 %v634
      %725 = vmatprep.subr.mxu0 %v637
      %726 = vmatpush1.msra.mxu0 %v636
      %727 = vmatprep.subr.mxu0 %v639
      %728 = vmatpush1.msra.mxu0 %v638
      %729 = vmatprep.subr.mxu0 %v641
      %730 = vmatpush1.msra.mxu0 %v640
      %731 = vmatprep.subr.mxu0 %v643
      %732 = vmatpush1.msra.mxu0 %v642
      %733 = vmatprep.subr.mxu0 %v645
      %734 = vmatpush1.msra.mxu0 %v644
      %735 = vmatprep.subr.mxu0 %v647
      %736 = vmatpush1.msra.mxu0 %v646
      %737 = vmatprep.subr.mxu0 %v649
      %738 = vmatpush1.msra.mxu0 %v648
      %739 = vmatprep.subr.mxu0 0.0
      %740 = vmatpush1.msra.mxu0 0.0
      %741 = vmatprep.subr.mxu0 0.0
      %742 = vmatpush1.msra.mxu0 0.0
      %743 = vmatprep.subr.mxu0 0.0
      %744 = vmatpush1.msra.mxu0 0.0
      %745 = vmatprep.subr.mxu0 0.0
      %746 = vmatpush1.msra.mxu0 0.0
      %747 = vmatprep.subr.mxu0 0.0
      %748 = vmatpush1.msra.mxu0 0.0
      %749 = vmatprep.subr.mxu0 0.0
      %750 = vmatpush1.msra.mxu0 0.0
      %751 = vmatprep.subr.mxu0 0.0
      %752 = vmatpush1.msra.mxu0 0.0
      %753 = vmatprep.subr.mxu0 0.0
      %754 = vmatpush1.msra.mxu0 0.0
      %755 = vmatprep.subr.mxu0 0.0
      %756 = vmatpush1.msra.mxu0 0.0
      %757 = vmatprep.subr.mxu0 0.0
      %758 = vmatpush1.msra.mxu0 0.0
      %759 = vmatprep.subr.mxu0 0.0
      %760 = vmatpush1.msra.mxu0 0.0
      %761 = vmatprep.subr.mxu0 0.0
      %762 = vmatpush1.msra.mxu0 0.0
      %763 = vmatprep.subr.mxu0 0.0
      %764 = vmatpush1.msra.mxu0 0.0
      %765 = vmatprep.subr.mxu0 0.0
      %766 = vmatpush1.msra.mxu0 0.0
      %767 = vmatprep.subr.mxu0 0.0
      %768 = vmatpush1.msra.mxu0 0.0
      %769 = vmatprep.subr.mxu0 0.0
      %770 = vmatpush1.msra.mxu0 0.0
      %771 = vmatprep.subr.mxu0 0.0
      %772 = vmatpush1.msra.mxu0 0.0
      %773 = vmatprep.subr.mxu0 0.0
      %774 = vmatpush1.msra.mxu0 0.0
      %775 = vmatprep.subr.mxu0 0.0
      %776 = vmatpush1.msra.mxu0 0.0
      %777 = vmatprep.subr.mxu0 0.0
      %778 = vmatpush1.msra.mxu0 0.0
      %779 = vmatprep.subr.mxu0 0.0
      %780 = vmatpush1.msra.mxu0 0.0
      %781 = vmatprep.subr.mxu0 0.0
      %782 = vmatpush1.msra.mxu0 0.0
      %783 = vmatprep.subr.mxu0 0.0
      %784 = vmatpush1.msra.mxu0 0.0
      %785 = vmatprep.subr.mxu0 0.0
      %786 = vmatpush1.msra.mxu0 0.0
      %787 = vmatprep.mubr.f32.mxu0 0.0
      %788 = vmatmul.mubr.f32.gmra.mrb[0].mxu0 %v700
      %v789 = vpop.f32.mrb[0].mxu0
      %v790 = vadd.f32 %v661, %v789
      %v791 = vpop.f32.mrb[0].mxu0
      %v792 = vadd.f32 %v661, %v791
      %793 = vmatprep.mubr.f32.mxu0 0.0
      %794 = vmatmul.mubr.f32.gmra.mrb[0].mxu0 %v703
      %v795 = vpop.f32.mrb[0].mxu0
      %v796 = vadd.f32 %v666, %v795
      %v797 = vpop.f32.mrb[0].mxu0
      %v798 = vadd.f32 %v666, %v797
      %799 = vmatprep.mubr.f32.mxu0 0.0
      %800 = vmatmul.mubr.f32.gmra.mrb[0].mxu0 %v706
      %v801 = vpop.f32.mrb[0].mxu0
      %v802 = vadd.f32 %v671, %v801
      %v803 = vpop.f32.mrb[0].mxu0
      %v804 = vadd.f32 %v671, %v803
      %805 = vmatprep.mubr.f32.mxu0 0.0
      %806 = vmatmul.mubr.f32.gmra.mrb[0].mxu0 %v709
      %v807 = vpop.f32.mrb[0].mxu0
      %v808 = vadd.f32 %v676, %v807
      %v809 = vpop.f32.mrb[0].mxu0
      %v810 = vadd.f32 %v676, %v809
      %811 = vmatprep.mubr.f32.mxu0 0.0
      %812 = vmatmul.mubr.f32.gmra.mrb[0].mxu0 %v712
      %v813 = vpop.f32.mrb[0].mxu0
      %v814 = vadd.f32 %v681, %v813
      %v815 = vpop.f32.mrb[0].mxu0
      %v816 = vadd.f32 %v681, %v815
      %817 = vmatprep.mubr.f32.mxu0 0.0
      %818 = vmatmul.mubr.f32.gmra.mrb[0].mxu0 %v715
      %v819 = vpop.f32.mrb[0].mxu0
      %v820 = vadd.f32 %v686, %v819
      %v821 = vpop.f32.mrb[0].mxu0
      %v822 = vadd.f32 %v686, %v821
      %823 = vmatprep.mubr.f32.mxu0 0.0
      %824 = vmatmul.mubr.f32.gmra.mrb[0].mxu0 %v718
      %v825 = vpop.f32.mrb[0].mxu0
      %v826 = vadd.f32 %v691, %v825
      %v827 = vpop.f32.mrb[0].mxu0
      %v828 = vadd.f32 %v691, %v827
      %829 = vmatprep.mubr.f32.mxu0 0.0
      %830 = vmatmul.mubr.f32.gmra.mrb[0].mxu0 %v721
      %v831 = vpop.f32.mrb[0].mxu0
      %v832 = vadd.f32 %v696, %v831
      %v833 = vpop.f32.mrb[0].mxu0
      %v834 = vadd.f32 %v696, %v833
      %835 = vdwg.mxu0
      %836 = vst [vmem:[%s484] sm:$0xff] %v790
      %837 = vst [vmem:[%s484 + $0x8] sm:$0xff] %v792
      %838 = vst [vmem:[%s484 + $0x10] sm:$0xff] %v796
      %839 = vst [vmem:[%s484 + $0x18] sm:$0xff] %v798
      %840 = vst [vmem:[%s484 + $0x20] sm:$0xff] %v802
      %841 = vst [vmem:[%s484 + $0x28] sm:$0xff] %v804
      %842 = vst [vmem:[%s484 + $0x30] sm:$0xff] %v808
      %843 = vst [vmem:[%s484 + $0x38] sm:$0xff] %v810
      %844 = vst [vmem:[%s484 + $0x40] sm:$0xff] %v814
      %845 = vst [vmem:[%s484 + $0x48] sm:$0xff] %v816
      %846 = vst [vmem:[%s484 + $0x50] sm:$0xff] %v820
      %847 = vst [vmem:[%s484 + $0x58] sm:$0xff] %v822
      %848 = vst [vmem:[%s484 + $0x60] sm:$0xff] %v826
      %849 = vst [vmem:[%s484 + $0x68] sm:$0xff] %v828
      %850 = vst [vmem:[%s484 + $0x70] sm:$0xff] %v832
      %851 = vst [vmem:[%s484 + $0x78] sm:$0xff] %v834
      %v852 = vld [vmem:[%s448] sm:$0xff]
      %v853 = vld [vmem:[%s448 + $0x8] sm:$0xff]
      %v854 = vld [vmem:[%s448 + $0x10] sm:$0xff]
      %v855 = vld [vmem:[%s448 + $0x18] sm:$0xff]
      %v856 = vld [vmem:[%s448 + $0x20] sm:$0xff]
      %v857 = vld [vmem:[%s448 + $0x28] sm:$0xff]
      %v858 = vld [vmem:[%s448 + $0x30] sm:$0xff]
      %v859 = vld [vmem:[%s448 + $0x38] sm:$0xff]
      %v860 = vld [vmem:[%s448 + $0x40] sm:$0xff]
      %v861 = vld [vmem:[%s448 + $0x48] sm:$0xff]
      %v862 = vld [vmem:[%s448 + $0x50] sm:$0xff]
      %v863 = vld [vmem:[%s448 + $0x58] sm:$0xff]
      %v864 = vld [vmem:[%s448 + $0x60] sm:$0xff]
      %v865 = vld [vmem:[%s448 + $0x68] sm:$0xff]
      %v866 = vld [vmem:[%s448 + $0x70] sm:$0xff]
      %v867 = vld [vmem:[%s448 + $0x78] sm:$0xff]
      %v868 = vld [vmem:[%s448 + $0x80] sm:$0xff]
      %v869 = vld [vmem:[%s448 + $0x88] sm:$0xff]
      %v870 = vld [vmem:[%s448 + $0x90] sm:$0xff]
      %v871 = vld [vmem:[%s448 + $0x98] sm:$0xff]
      %v872 = vld [vmem:[%s448 + $0xa0] sm:$0xff]
      %v873 = vld [vmem:[%s448 + $0xa8] sm:$0xff]
      %v874 = vld [vmem:[%s448 + $0xb0] sm:$0xff]
      %v875 = vld [vmem:[%s448 + $0xb8] sm:$0xff]
      %v876 = vld [vmem:[%s448 + $0xc0] sm:$0xff]
      %v877 = vld [vmem:[%s448 + $0xc8] sm:$0xff]
      %v878 = vld [vmem:[%s448 + $0xd0] sm:$0xff]
      %v879 = vld [vmem:[%s448 + $0xd8] sm:$0xff]
      %v880 = vld [vmem:[%s448 + $0xe0] sm:$0xff]
      %v881 = vld [vmem:[%s448 + $0xe8] sm:$0xff]
      %v882 = vld [vmem:[%s448 + $0xf0] sm:$0xff]
      %v883 = vld [vmem:[%s448 + $0xf8] sm:$0xff]
      %v884 = vpack.c.bf16 %v853, %v852
      %v885 = vpack.c.bf16 %v855, %v854
      %v886 = vpack.c.bf16 %v857, %v856
      %v887 = vpack.c.bf16 %v859, %v858
      %v888 = vpack.c.bf16 %v861, %v860
      %v889 = vpack.c.bf16 %v863, %v862
      %v890 = vpack.c.bf16 %v865, %v864
      %v891 = vpack.c.bf16 %v867, %v866
      %v892 = vpack.c.bf16 %v869, %v868
      %v893 = vpack.c.bf16 %v871, %v870
      %v894 = vpack.c.bf16 %v873, %v872
      %v895 = vpack.c.bf16 %v875, %v874
      %v896 = vpack.c.bf16 %v877, %v876
      %v897 = vpack.c.bf16 %v879, %v878
      %v898 = vpack.c.bf16 %v881, %v880
      %v899 = vpack.c.bf16 %v883, %v882
      %v900 = vld [vmem:[%s461] sm:$0xff]
      %v901 = vld [vmem:[%s461 + $0x8] sm:$0xff]
      %v902 = vld [vmem:[%s461 + $0x10] sm:$0xff]
      %v903 = vld [vmem:[%s461 + $0x18] sm:$0xff]
      %v904 = vld [vmem:[%s461 + $0x20] sm:$0xff]
      %v905 = vld [vmem:[%s461 + $0x28] sm:$0xff]
      %v906 = vld [vmem:[%s461 + $0x30] sm:$0xff]
      %v907 = vld [vmem:[%s461 + $0x38] sm:$0xff]
      %v908 = vld [vmem:[%s461 + $0x40] sm:$0xff]
      %v909 = vld [vmem:[%s461 + $0x48] sm:$0xff]
      %v910 = vld [vmem:[%s461 + $0x50] sm:$0xff]
      %v911 = vld [vmem:[%s461 + $0x58] sm:$0xff]
      %v912 = vld [vmem:[%s461 + $0x60] sm:$0xff]
      %v913 = vld [vmem:[%s461 + $0x68] sm:$0xff]
      %v914 = vld [vmem:[%s461 + $0x70] sm:$0xff]
      %v915 = vld [vmem:[%s461 + $0x78] sm:$0xff]
      %v916 = vpack.c.bf16 %v902, %v900
      %v917 = vpack.c.bf16 %v903, %v901
      %v918 = vpack.c.bf16 %v906, %v904
      %v919 = vpack.c.bf16 %v907, %v905
      %v920 = vpack.c.bf16 %v910, %v908
      %v921 = vpack.c.bf16 %v911, %v909
      %v922 = vpack.c.bf16 %v914, %v912
      %v923 = vpack.c.bf16 %v915, %v913
      %924 = vmatprep.subr.bf16.mxu0 0
      %925 = vmatpush1.bf16.msra.mxu0 %v884
      %926 = vmatprep.subr.bf16.mxu0 0
      %927 = vmatpush1.bf16.msra.mxu0 %v885
      %928 = vmatprep.subr.bf16.mxu0 0
      %929 = vmatpush1.bf16.msra.mxu0 %v886
      %930 = vmatprep.subr.bf16.mxu0 0
      %931 = vmatpush1.bf16.msra.mxu0 %v887
      %932 = vmatprep.subr.bf16.mxu0 0
      %933 = vmatpush1.bf16.msra.mxu0 %v888
      %934 = vmatprep.subr.bf16.mxu0 0
      %935 = vmatpush1.bf16.msra.mxu0 %v889
      %936 = vmatprep.subr.bf16.mxu0 0
      %937 = vmatpush1.bf16.msra.mxu0 %v890
      %938 = vmatprep.subr.bf16.mxu0 0
      %939 = vmatpush1.bf16.msra.mxu0 %v891
      %940 = vmatprep.subr.bf16.mxu0 0
      %941 = vmatpush1.bf16.msra.mxu0 %v892
      %942 = vmatprep.subr.bf16.mxu0 0
      %943 = vmatpush1.bf16.msra.mxu0 %v893
      %944 = vmatprep.subr.bf16.mxu0 0
      %945 = vmatpush1.bf16.msra.mxu0 %v894
      %946 = vmatprep.subr.bf16.mxu0 0
      %947 = vmatpush1.bf16.msra.mxu0 %v895
      %948 = vmatprep.subr.bf16.mxu0 0
      %949 = vmatpush1.bf16.msra.mxu0 %v896
      %950 = vmatprep.subr.bf16.mxu0 0
      %951 = vmatpush1.bf16.msra.mxu0 %v897
      %952 = vmatprep.subr.bf16.mxu0 0
      %953 = vmatpush1.bf16.msra.mxu0 %v898
      %954 = vmatprep.subr.bf16.mxu0 0
      %955 = vmatpush1.bf16.msra.mxu0 %v899
      %956 = vmatprep.mubr.bf16.mxu0 %v917
      %957 = vmatmul.mubr.bf16.gmra.mrb[0].mxu0 %v916
      %v958 = vpop.f32.mrb[0].mxu0
      %v959 = vadd.f32 0.0, %v958
      %v960 = vpop.f32.mrb[0].mxu0
      %v961 = vpop.f32.mrb[0].mxu0
      %v962 = vadd.f32 0.0, %v961
      %v963 = vpop.f32.mrb[0].mxu0
      %964 = vmatprep.mubr.bf16.mxu0 %v919
      %965 = vmatmul.mubr.bf16.gmra.mrb[0].mxu0 %v918
      %v966 = vpop.f32.mrb[0].mxu0
      %v967 = vadd.f32 0.0, %v966
      %v968 = vpop.f32.mrb[0].mxu0
      %v969 = vpop.f32.mrb[0].mxu0
      %v970 = vadd.f32 0.0, %v969
      %v971 = vpop.f32.mrb[0].mxu0
      %972 = vmatprep.mubr.bf16.mxu0 %v921
      %973 = vmatmul.mubr.bf16.gmra.mrb[0].mxu0 %v920
      %v974 = vpop.f32.mrb[0].mxu0
      %v975 = vadd.f32 0.0, %v974
      %v976 = vpop.f32.mrb[0].mxu0
      %v977 = vpop.f32.mrb[0].mxu0
      %v978 = vadd.f32 0.0, %v977
      %v979 = vpop.f32.mrb[0].mxu0
      %980 = vmatprep.mubr.bf16.mxu0 %v923
      %981 = vmatmul.mubr.bf16.gmra.mrb[0].mxu0 %v922
      %v982 = vpop.f32.mrb[0].mxu0
      %v983 = vadd.f32 0.0, %v982
      %v984 = vpop.f32.mrb[0].mxu0
      %v985 = vpop.f32.mrb[0].mxu0
      %v986 = vadd.f32 0.0, %v985
      %v987 = vpop.f32.mrb[0].mxu0
      %988 = vdwg.mxu0
      %v989 = vld [vmem:[%s3] sm:$0xff]
      %v990 = vld [vmem:[%s3 + $0x8] sm:$0xff]
      %v991 = vld [vmem:[%s473] sm:$0xff]
      %v992 = vld [vmem:[%s473 + $0x8] sm:$0xff]
      %v993 = vld [vmem:[%s473 + $0x10] sm:$0xff]
      %v994 = vld [vmem:[%s473 + $0x18] sm:$0xff]
      %v995 = vld [vmem:[%s473 + $0x20] sm:$0xff]
      %v996 = vld [vmem:[%s473 + $0x28] sm:$0xff]
      %v997 = vld [vmem:[%s473 + $0x30] sm:$0xff]
      %v998 = vld [vmem:[%s473 + $0x38] sm:$0xff]
      %1000 = vset.pattern.permute.xlu0 0
      %1001 = vperm.xlu0 %1000, %v991
      %v1002 = vpop.permute.xlu0 %1001
      %1005 = vset.pattern.permute.xlu0 0
      %1006 = vperm.xlu0 %1005, %v992
      %v1007 = vpop.permute.xlu0 %1006
      %1010 = vset.pattern.permute.xlu0 0
      %1011 = vperm.xlu0 %1010, %v993
      %v1012 = vpop.permute.xlu0 %1011
      %1015 = vset.pattern.permute.xlu0 0
      %1016 = vperm.xlu0 %1015, %v994
      %v1017 = vpop.permute.xlu0 %1016
      %1020 = vset.pattern.permute.xlu0 0
      %1021 = vperm.xlu0 %1020, %v995
      %v1022 = vpop.permute.xlu0 %1021
      %1025 = vset.pattern.permute.xlu0 0
      %1026 = vperm.xlu0 %1025, %v996
      %v1027 = vpop.permute.xlu0 %1026
      %1030 = vset.pattern.permute.xlu0 0
      %1031 = vperm.xlu0 %1030, %v997
      %v1032 = vpop.permute.xlu0 %1031
      %1035 = vset.pattern.permute.xlu0 0
      %1036 = vperm.xlu0 %1035, %v998
      %v1037 = vpop.permute.xlu0 %1036
      %vm1039 = vcmask 130048
      %v1041 = vsel %vm1039, %v959, 0
      %v1044 = vsel %vm1039, %v962, 0
      %v1047 = vsel %vm1039, %v967, 0
      %v1050 = vsel %vm1039, %v970, 0
      %v1053 = vsel %vm1039, %v975, 0
      %v1056 = vsel %vm1039, %v978, 0
      %v1059 = vsel %vm1039, %v983, 0
      %v1062 = vsel %vm1039, %v986, 0
      %1064 = vmatprep.subr.mxu0 0.0
      %1065 = vmatpush1.msra.mxu0 %v989
      %1066 = vmatprep.subr.mxu0 0.0
      %1067 = vmatpush1.msra.mxu0 %v990
      %1068 = vmatprep.subr.mxu0 0.0
      %1069 = vmatpush1.msra.mxu0 0.0
      %1070 = vmatprep.subr.mxu0 0.0
      %1071 = vmatpush1.msra.mxu0 0.0
      %1072 = vmatprep.subr.mxu0 0.0
      %1073 = vmatpush1.msra.mxu0 0.0
      %1074 = vmatprep.subr.mxu0 0.0
      %1075 = vmatpush1.msra.mxu0 0.0
      %1076 = vmatprep.subr.mxu0 0.0
      %1077 = vmatpush1.msra.mxu0 0.0
      %1078 = vmatprep.subr.mxu0 0.0
      %1079 = vmatpush1.msra.mxu0 0.0
      %1080 = vmatprep.subr.mxu0 0.0
      %1081 = vmatpush1.msra.mxu0 0.0
      %1082 = vmatprep.subr.mxu0 0.0
      %1083 = vmatpush1.msra.mxu0 0.0
      %1084 = vmatprep.subr.mxu0 0.0
      %1085 = vmatpush1.msra.mxu0 0.0
      %1086 = vmatprep.subr.mxu0 0.0
      %1087 = vmatpush1.msra.mxu0 0.0
      %1088 = vmatprep.subr.mxu0 0.0
      %1089 = vmatpush1.msra.mxu0 0.0
      %1090 = vmatprep.subr.mxu0 0.0
      %1091 = vmatpush1.msra.mxu0 0.0
      %1092 = vmatprep.subr.mxu0 0.0
      %1093 = vmatpush1.msra.mxu0 0.0
      %1094 = vmatprep.subr.mxu0 0.0
      %1095 = vmatpush1.msra.mxu0 0.0
      %1096 = vmatprep.subr.mxu0 0.0
      %1097 = vmatpush1.msra.mxu0 0.0
      %1098 = vmatprep.subr.mxu0 0.0
      %1099 = vmatpush1.msra.mxu0 0.0
      %1100 = vmatprep.subr.mxu0 0.0
      %1101 = vmatpush1.msra.mxu0 0.0
      %1102 = vmatprep.subr.mxu0 0.0
      %1103 = vmatpush1.msra.mxu0 0.0
      %1104 = vmatprep.subr.mxu0 0.0
      %1105 = vmatpush1.msra.mxu0 0.0
      %1106 = vmatprep.subr.mxu0 0.0
      %1107 = vmatpush1.msra.mxu0 0.0
      %1108 = vmatprep.subr.mxu0 0.0
      %1109 = vmatpush1.msra.mxu0 0.0
      %1110 = vmatprep.subr.mxu0 0.0
      %1111 = vmatpush1.msra.mxu0 0.0
      %1112 = vmatprep.subr.mxu0 0.0
      %1113 = vmatpush1.msra.mxu0 0.0
      %1114 = vmatprep.subr.mxu0 0.0
      %1115 = vmatpush1.msra.mxu0 0.0
      %1116 = vmatprep.subr.mxu0 0.0
      %1117 = vmatpush1.msra.mxu0 0.0
      %1118 = vmatprep.subr.mxu0 0.0
      %1119 = vmatpush1.msra.mxu0 0.0
      %1120 = vmatprep.subr.mxu0 0.0
      %1121 = vmatpush1.msra.mxu0 0.0
      %1122 = vmatprep.subr.mxu0 0.0
      %1123 = vmatpush1.msra.mxu0 0.0
      %1124 = vmatprep.subr.mxu0 0.0
      %1125 = vmatpush1.msra.mxu0 0.0
      %1126 = vmatprep.subr.mxu0 0.0
      %1127 = vmatpush1.msra.mxu0 0.0
      %1128 = vmatprep.mubr.f32.mxu0 0.0
      %1129 = vmatmul.mubr.f32.gmra.mrb[0].mxu0 %v1041
      %v1130 = vpop.f32.mrb[0].mxu0
      %v1131 = vadd.f32 %v1002, %v1130
      %v1132 = vpop.f32.mrb[0].mxu0
      %1133 = vmatprep.mubr.f32.mxu0 0.0
      %1134 = vmatmul.mubr.f32.gmra.mrb[0].mxu0 %v1044
      %v1135 = vpop.f32.mrb[0].mxu0
      %v1136 = vadd.f32 %v1007, %v1135
      %v1137 = vpop.f32.mrb[0].mxu0
      %1138 = vmatprep.mubr.f32.mxu0 0.0
      %1139 = vmatmul.mubr.f32.gmra.mrb[0].mxu0 %v1047
      %v1140 = vpop.f32.mrb[0].mxu0
      %v1141 = vadd.f32 %v1012, %v1140
      %v1142 = vpop.f32.mrb[0].mxu0
      %1143 = vmatprep.mubr.f32.mxu0 0.0
      %1144 = vmatmul.mubr.f32.gmra.mrb[0].mxu0 %v1050
      %v1145 = vpop.f32.mrb[0].mxu0
      %v1146 = vadd.f32 %v1017, %v1145
      %v1147 = vpop.f32.mrb[0].mxu0
      %1148 = vmatprep.mubr.f32.mxu0 0.0
      %1149 = vmatmul.mubr.f32.gmra.mrb[0].mxu0 %v1053
      %v1150 = vpop.f32.mrb[0].mxu0
      %v1151 = vadd.f32 %v1022, %v1150
      %v1152 = vpop.f32.mrb[0].mxu0
      %1153 = vmatprep.mubr.f32.mxu0 0.0
      %1154 = vmatmul.mubr.f32.gmra.mrb[0].mxu0 %v1056
      %v1155 = vpop.f32.mrb[0].mxu0
      %v1156 = vadd.f32 %v1027, %v1155
      %v1157 = vpop.f32.mrb[0].mxu0
      %1158 = vmatprep.mubr.f32.mxu0 0.0
      %1159 = vmatmul.mubr.f32.gmra.mrb[0].mxu0 %v1059
      %v1160 = vpop.f32.mrb[0].mxu0
      %v1161 = vadd.f32 %v1032, %v1160
      %v1162 = vpop.f32.mrb[0].mxu0
      %1163 = vmatprep.mubr.f32.mxu0 0.0
      %1164 = vmatmul.mubr.f32.gmra.mrb[0].mxu0 %v1062
      %v1165 = vpop.f32.mrb[0].mxu0
      %v1166 = vadd.f32 %v1037, %v1165
      %v1167 = vpop.f32.mrb[0].mxu0
      %1168 = vdwg.mxu0
      %1169 = vst.msk [vmem:[%s494] sm:$0xff] %vm698, %v1131
      %1170 = vst.msk [vmem:[%s494 + $0x8] sm:$0xff] %vm698, %v1136
      %1171 = vst.msk [vmem:[%s494 + $0x10] sm:$0xff] %vm698, %v1141
      %1172 = vst.msk [vmem:[%s494 + $0x18] sm:$0xff] %vm698, %v1146
      %1173 = vst.msk [vmem:[%s494 + $0x20] sm:$0xff] %vm698, %v1151
      %1174 = vst.msk [vmem:[%s494 + $0x28] sm:$0xff] %vm698, %v1156
      %1175 = vst.msk [vmem:[%s494 + $0x30] sm:$0xff] %vm698, %v1161
      %1176 = vst.msk [vmem:[%s494 + $0x38] sm:$0xff] %vm698, %v1166
      %s1177 = smul.u32 8, %s26
      %p1178 = scmp.lt.s32.totalorder %s25, 1
      %s1179 = scalar_select %p1178, %s25, 1
      %p1180 = scmp.lt.s32.totalorder %s1177, 15
      %s1181 = scalar_select %p1180, %s1177, 15
      %s1182 = smul.addr %s1181, 2
      %s1183 = smul.addr %s1179, 32
      %s1184 = sadd.s32 %s1182, %s1183
      %s1185 = smul.addr %s1184, 8
      %s1186 = scalar_lea.vmem %s8, %s1185
      %s1187 = smul.u32 8, %s26
      %p1188 = scmp.lt.s32.totalorder %s25, 1
      %s1189 = scalar_select %p1188, %s25, 1
      %p1190 = scmp.lt.s32.totalorder %s1187, 15
      %s1191 = scalar_select %p1190, %s1187, 15
      %s1192 = smul.addr %s1189, 16
      %s1193 = sadd.s32 %s1191, %s1192
      %s1194 = smul.addr %s1193, 8
      %s1195 = scalar_lea.vmem %s9, %s1194
      // Predicated region
      $region53: #{depth_head_forward.1} parent=51 // pred_check
        %p1196 = pneg %p251
      $region54: #{depth_head_forward.1} parent=51 // pred_check_branch
        %1198 = sbr.rel (%p1196) target = $region56
      $region55: #{depth_head_forward.1} parent=51 // pred_region
        %s1199 = smul.u32 8, %s26
      $region56: #{depth_head_forward.1} parent=51 // pred_fallthru
        _
      // Predicated region
      $region57: #{depth_head_forward.1} parent=51 // pred_check
        %p1200 = pneg %p279
      $region58: #{depth_head_forward.1} parent=51 // pred_check_branch
        %1202 = sbr.rel (%p1200) target = $region60
      $region59: #{depth_head_forward.1} parent=51 // pred_region
        %s1203 = smul.u32 8, %s26
      $region60: #{depth_head_forward.1} parent=51 // pred_fallthru
        _
    $region52: #{depth_head_forward.1} parent=5 // pred_fallthru
      _
    %p1204 = scmp.le.s32.totalorder 2, %s16
    // Predicated region
    $region61: #{depth_head_forward.1} parent=5 // pred_check
      %p1205 = pneg %p1204
    $region62: #{depth_head_forward.1} parent=5 // pred_check_branch
      %1207 = sbr.rel (%p1205) target = $region64
    $region63: #{depth_head_forward.1} parent=5 // pred_region
      %s1208 = ssub.s32 %s16, 2
      // Predicated region
      $region65: #{depth_head_forward.1} parent=63 // pred_check
        %p1209 = pneg %p257
      $region66: #{depth_head_forward.1} parent=63 // pred_check_branch
        %1211 = sbr.rel (%p1209) target = $region68
      $region67: #{depth_head_forward.1} parent=63 // pred_region
        %s1212 = smul.u32 8, %s28
        %p1213 = scmp.lt.s32.totalorder %s27, 1
        %s1214 = scalar_select %p1213, %s27, 1
        %p1215 = scmp.lt.s32.totalorder %s1212, 15
        %s1216 = scalar_select %p1215, %s1212, 15
        %s1217 = smul.addr %s1216, 2
        %s1218 = smul.addr %s1214, 32
        %s1219 = sadd.s32 %s1217, %s1218
        %s1220 = smul.addr %s1219, 8
        %s1221 = scalar_lea.vmem %s8, %s1220
      $region68: #{depth_head_forward.1} parent=63 // pred_fallthru
        _
      // Predicated region
      $region69: #{depth_head_forward.1} parent=63 // pred_check
        %p1222 = pneg %p285
      $region70: #{depth_head_forward.1} parent=63 // pred_check_branch
        %1224 = sbr.rel (%p1222) target = $region72
      $region71: #{depth_head_forward.1} parent=63 // pred_region
        %s1225 = smul.u32 8, %s28
        %p1226 = scmp.lt.s32.totalorder %s27, 1
        %s1227 = scalar_select %p1226, %s27, 1
        %p1228 = scmp.lt.s32.totalorder %s1225, 15
        %s1229 = scalar_select %p1228, %s1225, 15
        %s1230 = smul.addr %s1227, 16
        %s1231 = sadd.s32 %s1229, %s1230
        %s1232 = smul.addr %s1231, 8
        %s1233 = scalar_lea.vmem %s9, %s1232
      $region72: #{depth_head_forward.1} parent=63 // pred_fallthru
        _
    $region64: #{depth_head_forward.1} parent=5 // pred_fallthru
      _
  $region6: #{depth_head_forward.1} parent=0 // loop_footer
    %s20 = sadd.s32 1, %s16
  $region7: #{depth_head_forward.1} parent=0 // loop_footer_branch
    %15 = sbr.rel target = $region3
  $region8: #{depth_head_forward.1} parent=0 // loop_exit
    _

</llo_original>
